<compile_context>
chip_gen: v6e
topology: v6e:2x2x1
jax: 0.10.0
libtpu: 0.0.40
codegen_flags: <defaults>
</compile_context>

<pallas_src>
import functools

import jax
import jax.numpy as jnp
from jax import lax
from jax.experimental import pallas as pl
from jax.experimental.pallas import tpu as pltpu


# ----------------------------------------------------------------------------
# 1) Heatmap loss (MSE or smooth-L1, mean reduction) — lane-dense, row-tiled.
#    grid = (nc, k_tiles): leading axis "parallel" (v7x megacore), tile axis
#    "arbitrary" (output block stays VMEM-resident and is used as accumulator).
# ----------------------------------------------------------------------------
def _heatmap_loss_kernel(p_ref, t_ref, o_ref, *, kind, rows, row_tile, k_tiles,
                         mask_tail):
    j = pl.program_id(0)            # parallel (core) axis
    k = pl.program_id(1)            # reduction (tile) axis

    @pl.when(k == 0)
    def _():
        o_ref[...] = jnp.zeros_like(o_ref)

    d = p_ref[...].astype(jnp.float32) - t_ref[...].astype(jnp.float32)
    if kind == "mse_loss":
        e = d * d
    else:                           # smooth_l1_loss, beta = 1.0 (PyTorch default)
        ad = jnp.abs(d)
        e = jnp.where(ad < 1.0, 0.5 * d * d, ad - 0.5)

    if mask_tail:
        # last tile may be partial: mask rows past the true row count
        gi = (j * k_tiles + k) * row_tile + lax.broadcasted_iota(jnp.int32, e.shape, 0)
        e = jnp.where(gi < rows, e, 0.0)

    # per-(8,128) partial sums with plain VPU adds; collapse to a scalar only in
    # the wrapper (one final jnp.sum over (nc*8, 128) values).
    if row_tile % 8 == 0:
        o_ref[...] += jnp.sum(e.reshape(row_tile // 8, 8, 128), axis=0)
    else:                           # tiny inputs (single sub-8-row block)
        o_ref[0:1, :] += jnp.sum(e, axis=0, keepdims=True)


def heatmap_loss(pred, tgt, kind):
    LANE = 128
    ROW_TILE = 2048                 # 1 MiB f32 / input block; ~86% of HBM roofline
    total = int(pred.size)

    if total % LANE == 0:
        rows = total // LANE
        pf = pred.reshape(rows, LANE)         # pure reshape — no HBM copy
        tf = tgt.reshape(rows, LANE)
    else:
        # TODO(synk): rare ragged case still pads the last partial lane-row (small copy)
        rows = pl.cdiv(total, LANE)
        pad = rows * LANE - total
        pf = jnp.pad(pred.reshape(-1), (0, pad)).reshape(rows, LANE)
        tf = jnp.pad(tgt.reshape(-1), (0, pad)).reshape(rows, LANE)

    if rows <= ROW_TILE:
        row_tile, n_tiles = rows, 1
    else:
        row_tile, n_tiles = ROW_TILE, pl.cdiv(rows, ROW_TILE)

    # split the tile axis over a leading "parallel" grid axis so both v7x
    # TensorCores run; harmless (sequential) on single-core v5e/v6e.
    if n_tiles >= 2 and n_tiles % 2 == 0:
        nc, k_tiles = 2, n_tiles // 2
    else:
        nc, k_tiles = 1, n_tiles

    mask_tail = (rows % row_tile) != 0
    kernel = functools.partial(
        _heatmap_loss_kernel, kind=kind, rows=rows, row_tile=row_tile,
        k_tiles=k_tiles, mask_tail=mask_tail)

    out = pl.pallas_call(
        kernel,
        out_shape=jax.ShapeDtypeStruct((nc * 8, LANE), jnp.float32),
        grid=(nc, k_tiles),
        in_specs=[
            pl.BlockSpec((row_tile, LANE), lambda j, k: (j * k_tiles + k, 0)),
            pl.BlockSpec((row_tile, LANE), lambda j, k: (j * k_tiles + k, 0)),
        ],
        out_specs=pl.BlockSpec((8, LANE), lambda j, k: (j, 0)),
        compiler_params=pltpu.CompilerParams(
            dimension_semantics=("parallel", "arbitrary")),
    )(pf, tf)
    return jnp.sum(out) / float(total)


# ----------------------------------------------------------------------------
# 2) kNN (k == 1): plain XLA — ~B*topk*K*2 FLOPs is not worth a kernel launch
#    (per perf review); XLA fuses it for free. Ties resolve to the lowest index.
# ----------------------------------------------------------------------------
def knn_nearest(pred_kps, centers):
    d = (pred_kps[:, :, None, :].astype(jnp.float32)
         - centers[:, None, :, :].astype(jnp.float32))          # (B, topk, K, 2)
    dist = jnp.sum(d * d, axis=-1)                               # (B, topk, K)
    return jnp.argmin(dist, axis=-1).astype(jnp.int32)           # (B, topk), 0-based


# ----------------------------------------------------------------------------
# 3) Fused: per-batch-item block of topk ROIs — in-kernel nearest-mask gather
#    + torchvision-style roi_pool + cross-entropy partial sum.  Labels never
#    hit HBM.  grid=(B,), fully "parallel" (independent partial sums).
# ----------------------------------------------------------------------------
def _roi_ce_kernel(inds_ref, coords_ref, mask_ref, logits_ref, o_ref, *, out_size):
    S = out_size
    K, H, W = mask_ref.shape[1], mask_ref.shape[2], mask_ref.shape[3]
    topk = inds_ref.shape[1]
    NEG = jnp.float32(-jnp.inf)

    # ---- gather the nearest-center target mask for every ROI (K static, tiny)
    mk = mask_ref[0].astype(jnp.float32)               # (K, H, W)
    ind = inds_ref[0]                                   # (topk, 1) int32
    xm = jnp.zeros((topk, H, W), jnp.float32)
    for kk in range(K):                                 # static unroll, VPU selects
        xm = jnp.where((ind == kk)[:, :, None], mk[kk][None, :, :], xm)

    # ---- torchvision roi_pool (spatial_scale=1, max pool), vectorized over ROIs
    cb = coords_ref[0].astype(jnp.float32)              # (topk, 4) = [x1, y1, x2, y2]
    rs_w = jnp.floor(cb[:, 0:1] + 0.5)                   # (topk, 1)
    rs_h = jnp.floor(cb[:, 1:2] + 0.5)
    re_w = jnp.floor(cb[:, 2:3] + 0.5)
    re_h = jnp.floor(cb[:, 3:4] + 0.5)
    bin_w = jnp.maximum(re_w - rs_w + 1.0, 1.0) / float(S)
    bin_h = jnp.maximum(re_h - rs_h + 1.0, 1.0) / float(S)

    ps = lax.broadcasted_iota(jnp.float32, (topk, S), 1)           # pooled bin idx
    hs = jnp.clip(jnp.floor(ps * bin_h) + rs_h, 0.0, float(H))     # (topk, S)
    he = jnp.clip(jnp.ceil((ps + 1.0) * bin_h) + rs_h, 0.0, float(H))
    ws = jnp.clip(jnp.floor(ps * bin_w) + rs_w, 0.0, float(W))
    we = jnp.clip(jnp.ceil((ps + 1.0) * bin_w) + rs_w, 0.0, float(W))

    # single masked reduce over H, then over W (no per-pooled-row loop / concat).
    # TODO(synk): chunk over the pooled-row axis if topk*S*H*W ever nears the
    # 64 MiB v7x VMEM budget; at these sizes the intermediates are KiBs.
    h_io = lax.broadcasted_iota(jnp.float32, (topk, S, H, 1), 2)
    mh = (h_io >= hs[:, :, None, None]) & (h_io < he[:, :, None, None])
    col_max = jnp.max(jnp.where(mh, xm[:, None, :, :], NEG), axis=2)       # (topk,S,W)

    w_io = lax.broadcasted_iota(jnp.float32, (topk, S, W), 2)
    mw = (w_io >= ws[:, :, None]) & (w_io < we[:, :, None])                # (topk,S,W)
    expanded = jnp.where(mw[:, None, :, :], col_max[:, :, None, :], NEG)   # (topk,Sph,Spw,W)
    pooled = jnp.max(expanded, axis=-1)                                     # (topk,S,S)
    pooled = jnp.where(pooled == NEG, 0.0, pooled)                          # empty bins -> 0

    # ---- cross-entropy (sum over this block), lane-dense logits slab --------
    # NOTE: labels outside [0, C) silently give loss = lse (PyTorch nll would raise);
    # fine for 0/1 binary masks with C = 2.
    z = logits_ref[0].astype(jnp.float32)               # (C, topk, S*S)
    zs = z - jnp.max(z, axis=0, keepdims=True)
    loss_sum = jnp.sum(jnp.log(jnp.sum(jnp.exp(zs), axis=0)))               # sum(lse)
    for p in range(S):                                   # static: pooled row p
        zp = zs[:, :, p * S:(p + 1) * S]                 # (C, topk, S) static slice
        labp = pooled[:, p, :].astype(jnp.int32)         # (topk, S)
        ciop = lax.broadcasted_iota(jnp.int32, zp.shape, 0)
        loss_sum = loss_sum - jnp.sum(jnp.where(ciop == labp[None, :, :], zp, 0.0))
    o_ref[...] = jnp.full((1, 1, 1), loss_sum, jnp.float32)


def roi_ce_loss(mask_logits, bbox, mask_targets, nn_inds):
    N, C, S, _ = mask_logits.shape                       # N == B * topk (gt_knn == 1)
    B, K, H, W = mask_targets.shape
    topk = N // B

    # channel-first, lane-dense logits slab (B, C, topk, S*S) — cheap XLA transpose.
    logits_r = jnp.transpose(mask_logits.reshape(B, topk, C, S * S), (0, 2, 1, 3))
    coords = bbox[:, 1:5].astype(jnp.float32).reshape(B, topk, 4)
    inds = nn_inds.astype(jnp.int32).reshape(B, topk, 1)

    out = pl.pallas_call(
        functools.partial(_roi_ce_kernel, out_size=S),
        out_shape=jax.ShapeDtypeStruct((B, 1, 1), jnp.float32),
        grid=(B,),
        in_specs=[
            pl.BlockSpec((1, topk, 1), lambda n: (n, 0, 0)),
            pl.BlockSpec((1, topk, 4), lambda n: (n, 0, 0)),
            pl.BlockSpec((1, K, H, W), lambda n: (n, 0, 0, 0)),
            pl.BlockSpec((1, C, topk, S * S), lambda n: (n, 0, 0, 0)),
        ],
        out_specs=pl.BlockSpec((1, 1, 1), lambda n: (n, 0, 0)),
        compiler_params=pltpu.CompilerParams(dimension_semantics=("parallel",)),
    )(inds, coords, mask_targets, logits_r)
    return jnp.sum(out) / float(N * S * S)               # mean over all CE elements


# ----------------------------------------------------------------------------
# MaskCriterion.forward
# ----------------------------------------------------------------------------
def mask_criterion_forward(outputs, targets, heatmap_loss_kind="mse_loss", gt_knn=1):
    if heatmap_loss_kind == "mse_loss":
        losses = {"mse_loss": heatmap_loss(outputs["heatmap"], targets["heatmap"], "mse_loss")}
    elif heatmap_loss_kind == "smooth_l1_loss":
        losses = {"sl1_loss": heatmap_loss(outputs["heatmap"], targets["heatmap"], "smooth_l1_loss")}
    else:
        raise NotImplementedError

    mask_logits = outputs["mask"]          # (B*topk, C, S, S)
    bbox = outputs["bbox"]                 # (B*topk, 5)
    pred_kps = outputs["topk_kps"]         # (B, topk, 2)
    mask_targets = targets["mask"]         # (B, ori_kps, H, W)
    centers = targets["centers_orig"]      # (B, ori_kps, 2)

    if gt_knn != 1:
        # TODO(synk): gt_knn > 1 path (multi-NN repeat + per-sample CE min) not implemented.
        raise NotImplementedError

    nn_inds = knn_nearest(pred_kps, centers)             # (B, topk), 0-based
    losses["mask_loss"] = roi_ce_loss(mask_logits, bbox, mask_targets, nn_inds)
    return losses


# ----------------------------------------------------------------------------
if __name__ == "__main__":
    B, topk, ori_kps, H, W, S, C = 2, 8, 4, 16, 16, 4, 2

    key = jax.random.PRNGKey(0)
    ks = jax.random.split(key, 12)

    heat_pred = jax.random.normal(ks[0], (B, 1, 32, 32), jnp.float32)
    heat_tgt = jax.random.normal(ks[1], (B, 1, 32, 32), jnp.float32)
    mask_logits = jax.random.normal(ks[2], (B * topk, C, S, S), jnp.float32)
    pred_kps = jax.random.uniform(ks[3], (B, topk, 2), jnp.float32, 0.0, float(W - 1))
    centers = jax.random.uniform(ks[4], (B, ori_kps, 2), jnp.float32, 0.0, float(W - 1))
    mask_tgt = (jax.random.uniform(ks[5], (B, ori_kps, H, W)) > 0.5).astype(jnp.float32)

    x1 = jax.random.uniform(ks[6], (B * topk,), jnp.float32, 0.0, 8.0)
    y1 = jax.random.uniform(ks[7], (B * topk,), jnp.float32, 0.0, 8.0)
    x2 = jnp.clip(x1 + jax.random.uniform(ks[8], (B * topk,), jnp.float32, 2.0, 7.0), 0.0, float(W - 1))
    y2 = jnp.clip(y1 + jax.random.uniform(ks[9], (B * topk,), jnp.float32, 2.0, 7.0), 0.0, float(H - 1))
    bbox = jnp.stack(
        [jnp.arange(B * topk, dtype=jnp.float32), x1, y1, x2, y2], axis=1
    )  # (B*topk, 5)

    outputs = {"heatmap": heat_pred, "mask": mask_logits, "bbox": bbox, "topk_kps": pred_kps}
    targets = {"heatmap": heat_tgt, "mask": mask_tgt, "centers_orig": centers}

    losses = mask_criterion_forward(outputs, targets, "mse_loss", gt_knn=1)
    losses = jax.block_until_ready(losses)

    # sanity: heatmap loss matches plain XLA (single-tile path), mask loss finite
    ref_mse = jnp.mean((heat_pred - heat_tgt) ** 2)
    assert jnp.allclose(losses["mse_loss"], ref_mse, rtol=1e-3, atol=1e-5), (losses["mse_loss"], ref_mse)
    assert bool(jnp.isfinite(losses["mask_loss"])), losses

    # sanity: exercise the multi-tile + 2-way-parallel + ragged-tail heatmap path
    big_p = jax.random.normal(ks[10], (2, 1, 1028, 128), jnp.float32)
    big_t = jax.random.normal(ks[11], (2, 1, 1028, 128), jnp.float32)
    got = jax.block_until_ready(heatmap_loss(big_p, big_t, "mse_loss"))
    ref = jnp.mean((big_p - big_t) ** 2)
    assert jnp.allclose(got, ref, rtol=1e-3, atol=1e-5), (got, ref)

    print("KERNEL_OK")
</pallas_src>

<mosaic_0001>
module attributes {stable_mosaic.version = 11 : i64} {
  func.func @_heatmap_loss_kernel(%arg0: i32, %arg1: i32, %arg2: memref<16x128xf32, #tpu.memory_space<vmem>>, %arg3: memref<16x128xf32, #tpu.memory_space<vmem>>, %arg4: memref<8x128xf32, #tpu.memory_space<vmem>>) attributes {dimension_semantics = [#tpu.dimension_semantics<parallel>, #tpu.dimension_semantics<arbitrary>], iteration_bounds = array<i64: 1, 1>, scalar_prefetch = 0 : i64, scratch_operands = 0 : i64, tpu.core_type = #tpu.core_type<tc>, window_params = [{transform_indices = @transform_0, window_bounds = array<i64: 16, 128>}, {transform_indices = @transform_1, window_bounds = array<i64: 16, 128>}, {transform_indices = @transform_2, window_bounds = array<i64: 8, 128>}]} {
    %c0_i32 = arith.constant 0 : i32
    %0 = arith.cmpi eq, %arg1, %c0_i32 : i32
    %1 = arith.extui %0 : i1 to i32
    %c0_i32_0 = arith.constant 0 : i32
    %2 = arith.cmpi ne, %1, %c0_i32_0 : i32
    scf.if %2 {
      %cst_8 = arith.constant 0.000000e+00 : f32
      %12 = vector.broadcast %cst_8 : f32 to vector<8x128xf32>
      %c0_9 = arith.constant 0 : index
      %c0_10 = arith.constant 0 : index
      %13 = vector.load %arg4[%c0_9, %c0_10] : memref<8x128xf32, #tpu.memory_space<vmem>>, vector<8x128xf32>
      tpu.vector_store %arg4[%c0_9, %c0_10], %12 {strides = array<i32>} : memref<8x128xf32, #tpu.memory_space<vmem>>, vector<8x128xf32>,
    } else {
    }
    %c0 = arith.constant 0 : index
    %c0_1 = arith.constant 0 : index
    %3 = vector.load %arg2[%c0, %c0_1] : memref<16x128xf32, #tpu.memory_space<vmem>>, vector<16x128xf32>
    %c0_2 = arith.constant 0 : index
    %c0_3 = arith.constant 0 : index
    %4 = vector.load %arg3[%c0_2, %c0_3] : memref<16x128xf32, #tpu.memory_space<vmem>>, vector<16x128xf32>
    %5 = arith.subf %3, %4 : vector<16x128xf32>
    %6 = arith.mulf %5, %5 : vector<16x128xf32>
    %c0_4 = arith.constant 0 : index
    %c0_5 = arith.constant 0 : index
    %7 = vector.load %arg4[%c0_4, %c0_5] : memref<8x128xf32, #tpu.memory_space<vmem>>, vector<8x128xf32>
    %8 = vector.shape_cast %6 : vector<16x128xf32> to vector<2x8x128xf32>
    %cst = arith.constant dense<0.000000e+00> : vector<8x128xf32>
    %9 = vector.multi_reduction <add>, %8, %cst [0] : vector<2x8x128xf32> to vector<8x128xf32>
    %10 = arith.addf %7, %9 : vector<8x128xf32>
    %c0_6 = arith.constant 0 : index
    %c0_7 = arith.constant 0 : index
    %11 = vector.load %arg4[%c0_6, %c0_7] : memref<8x128xf32, #tpu.memory_space<vmem>>, vector<8x128xf32>
    tpu.vector_store %arg4[%c0_6, %c0_7], %10 {strides = array<i32>} : memref<8x128xf32, #tpu.memory_space<vmem>>, vector<8x128xf32>,
    return
  }
  func.func @transform_0(%arg0: i32, %arg1: i32) -> (i32, i32) {
    %c1_i32 = arith.constant 1 : i32
    %0 = arith.muli %arg0, %c1_i32 : i32
    %1 = arith.addi %0, %arg1 : i32
    %c0_i32 = arith.constant 0 : i32
    %c0_i32_0 = arith.constant 0 : i32
    return %1, %c0_i32 : i32, i32
  }
  func.func @transform_1(%arg0: i32, %arg1: i32) -> (i32, i32) {
    %c1_i32 = arith.constant 1 : i32
    %0 = arith.muli %arg0, %c1_i32 : i32
    %1 = arith.addi %0, %arg1 : i32
    %c0_i32 = arith.constant 0 : i32
    %c0_i32_0 = arith.constant 0 : i32
    return %1, %c0_i32 : i32, i32
  }
  func.func @transform_2(%arg0: i32, %arg1: i32) -> (i32, i32) {
    %c0_i32 = arith.constant 0 : i32
    %c0_i32_0 = arith.constant 0 : i32
    return %arg0, %c0_i32 : i32, i32
  }
}

</mosaic_0001>

<llo_original>
// kernel: tpu_custom_call.1
$region0: #{tpu_custom_call.1}
  #allocation0 [shape = 'u32[]', space=smem, size = 0x4, offset = 0x4, fixed_abs, tag = 'smem constant byte address 0x4 - core index']
  #allocation1 [shape = 'u32[144,128]{1,0:T(1,128)}', space=vmem, size = 0x12000, scoped, tag = 'internal scratch']
  %s0 = inlined_call_operand.hbm [shape: f32[16,128], index: 0, kind: input, shape index: {}]
  %s1 = inlined_call_operand.hbm [shape: f32[16,128], index: 1, kind: input, shape index: {}]
  %s2 = inlined_call_operand.hbm [shape: f32[8,128], index: 2, kind: output, shape index: {}]
  %s3 = sld [smem:[#allocation0]]
  $region30: #{tpu_custom_call.1} parent=0
    _
  %s5 = ssub.s32 1, %s3
  %s6 = scalar_select 0, %s5, %s3
  $region1: #{tpu_custom_call.1} parent=0
    #allocation2 [shape = 'u8[8192]{0}', space=vmem, size = 0x2000, scoped, tag = 'input window, operand 0, single buffered']
    #allocation3 [shape = 's32[1]{0}', space=sflag, size = 0x4, scoped, tag = 'scoped memory for tpu_custom_call.1']
    #allocation4 [shape = 's32[1]{0}', space=sflag, size = 0x4, scoped, tag = 'scoped memory for tpu_custom_call.1']
    #allocation5 [shape = 'u8[8192]{0}', space=vmem, size = 0x2000, scoped, tag = 'input window, operand 1, single buffered']
    #allocation6 [shape = 's32[1]{0}', space=sflag, size = 0x4, scoped, tag = 'scoped memory for tpu_custom_call.1']
    #allocation7 [shape = 'u8[4096]{0}', space=vmem, size = 0x1000, scoped, tag = 'output window, operand 0, single buffered']
    %7 = vsyncpa [#allocation3], 0
    %8 = vsyncpa [#allocation6], 0
    %9 = vsyncpa [#allocation4], 0
    // Predicated region
    $region2: #{tpu_custom_call.1} parent=1 // pred_check
      _
    $region3: #{tpu_custom_call.1} parent=1 // pred_check_branch
      %11 = sbr.rel (0) target = $region5
    $region4: #{tpu_custom_call.1} parent=1 // pred_region
      %s12 = sadd.s32 0, 0
      %s13 = smul.u32 2, %s12
      %s15 = ssub.s32 256, 256
      %16 = vsyncadd [#allocation3], %s15
      %s17 = smul.addr %s13, 128
      %s18 = scalar_lea.hbm %s0, %s17
      %s19 = sshll.u32 [#allocation2], 4
      %s20 = int_to_ptr.vmem [resolvable:$true] %s19
      %25 = dma.hbm_to_vmem [thread:$0]  %s18, 256, %s20, [#allocation3], 128, 128, 8
    $region5: #{tpu_custom_call.1} parent=1 // pred_fallthru
      _
    // Predicated region
    $region6: #{tpu_custom_call.1} parent=1 // pred_check
      _
    $region7: #{tpu_custom_call.1} parent=1 // pred_check_branch
      %27 = sbr.rel (0) target = $region9
    $region8: #{tpu_custom_call.1} parent=1 // pred_region
      %s28 = sadd.s32 0, 0
      %s29 = smul.u32 2, %s28
      %s31 = ssub.s32 256, 256
      %32 = vsyncadd [#allocation6], %s31
      %s33 = smul.addr %s29, 128
      %s34 = scalar_lea.hbm %s1, %s33
      %s35 = sshll.u32 [#allocation5], 4
      %s36 = int_to_ptr.vmem [resolvable:$true] %s35
      %41 = dma.hbm_to_vmem [thread:$0]  %s34, 256, %s36, [#allocation6], 128, 128, 8
    $region9: #{tpu_custom_call.1} parent=1 // pred_fallthru
      _
    // Predicated region
    $region10: #{tpu_custom_call.1} parent=1 // pred_check
      _
    $region11: #{tpu_custom_call.1} parent=1 // pred_check_branch
      %43 = sbr.rel (0) target = $region13
    $region12: #{tpu_custom_call.1} parent=1 // pred_region
      %44 = dma.done [#allocation3], 256
    $region13: #{tpu_custom_call.1} parent=1 // pred_fallthru
      _
    // Predicated region
    $region14: #{tpu_custom_call.1} parent=1 // pred_check
      _
    $region15: #{tpu_custom_call.1} parent=1 // pred_check_branch
      %46 = sbr.rel (0) target = $region17
    $region16: #{tpu_custom_call.1} parent=1 // pred_region
      %47 = dma.done [#allocation6], 256
    $region17: #{tpu_custom_call.1} parent=1 // pred_fallthru
      _
    %s48 = sadd.s32 0, 0
    %s49 = smul.u32 2, %s48
    %s50 = sadd.s32 0, 0
    %s51 = smul.u32 2, %s50
    %p52 = scmp.eq.s32.totalorder 0, 0
    // Predicated region
    $region18: #{tpu_custom_call.1} parent=1 // pred_check
      %p53 = pneg %p52
    $region19: #{tpu_custom_call.1} parent=1 // pred_check_branch
      %55 = sbr.rel (%p53) target = $region21
    $region20: #{tpu_custom_call.1} parent=1 // pred_region
      %56 = vst [vmem:[#allocation7] sm:$0xff] 0.0
    $region21: #{tpu_custom_call.1} parent=1 // pred_fallthru
      _
    %v57 = vld [vmem:[#allocation2] sm:$0xff]
    %v58 = vld [vmem:[#allocation2 + $0x8] sm:$0xff]
    %v59 = vld [vmem:[#allocation5] sm:$0xff]
    %v60 = vld [vmem:[#allocation5 + $0x8] sm:$0xff]
    %v61 = vsub.f32 %v57, %v59
    %v62 = vsub.f32 %v58, %v60
    %v63 = vmul.f32 %v61, %v61
    %v64 = vmul.f32 %v62, %v62
    %v65 = vld [vmem:[#allocation7] sm:$0xff]
    %v66 = vadd.f32 %v63, %v64
    %v67 = vadd.f32 %v65, %v66
    %68 = vst [vmem:[#allocation7] sm:$0xff] %v67
    // Predicated region
    $region22: #{tpu_custom_call.1} parent=1 // pred_check
      _
    $region23: #{tpu_custom_call.1} parent=1 // pred_check_branch
      %70 = sbr.rel (0) target = $region25
    $region24: #{tpu_custom_call.1} parent=1 // pred_region
      %s72 = ssub.s32 128, 128
      %73 = vsyncadd [#allocation4], %s72
      %s75 = sshll.u32 [#allocation7], 4
      %s76 = int_to_ptr.vmem [resolvable:$true] %s75
      %78 = dma.vmem_to_hbm [thread:$0]  %s76, 128, %s2, [#allocation4]
    $region25: #{tpu_custom_call.1} parent=1 // pred_fallthru
      _
    // Predicated region
    $region26: #{tpu_custom_call.1} parent=1 // pred_check
      _
    $region27: #{tpu_custom_call.1} parent=1 // pred_check_branch
      %80 = sbr.rel (0) target = $region29
    $region28: #{tpu_custom_call.1} parent=1 // pred_region
      %81 = dma.done [#allocation4], 128
    $region29: #{tpu_custom_call.1} parent=1 // pred_fallthru
      _
    %82 = vsyncpa [#allocation3], 1
    %83 = vsyncpa [#allocation6], 1
    %84 = vsyncpa [#allocation4], 1

</llo_original>
